<compile_context>
chip_gen: v7x
topology: tpu7x:2x2x1
jax: 0.10.0
libtpu: 0.0.40
codegen_flags: <defaults>
</compile_context>

<pallas_src>
import functools

import jax
import jax.numpy as jnp
from jax.experimental import pallas as pl
from jax.experimental.pallas import tpu as pltpu


def transition_normal_kernel(xa_ref, w1_ref, w2_ref, wout_ref, b_ref, out_ref,
                             *, h1, h2):
    compute_dtype = w1_ref.dtype  # bf16 matmul operands, f32 accumulation

    xa = xa_ref[...].astype(compute_dtype)

    # Packed biases [b1 | b2 | bout], loaded once (f32, broadcast over rows).
    b = b_ref[...]
    b1 = b[:, :h1]
    b2 = b[:, h1:h1 + h2]
    bout = b[:, h1 + h2:]

    # Layer 1 (concat already done in the wrapper): xa @ W1 + b1
    z = jnp.dot(xa, w1_ref[...], preferred_element_type=jnp.float32) + b1
    h = jnp.maximum(z, 0.0)  # relu, kept in f32 (v5e-friendly)

    # Layer 2
    z = jnp.dot(h.astype(compute_dtype), w2_ref[...],
                preferred_element_type=jnp.float32) + b2
    h = jnp.maximum(z, 0.0)

    # Fused output heads: [mu | logvar] in one MXU pass.
    z = jnp.dot(h.astype(compute_dtype), wout_ref[...],
                preferred_element_type=jnp.float32) + bout

    # Lane-dense store: transpose [tb, 2L] -> [2L, tb] so the last (lane) dim
    # is the wide batch tile; transpose rides the otherwise-idle XLU slot.
    out_ref[...] = z.T.astype(out_ref.dtype)


def _round_up(x, m):
    return ((x + m - 1) // m) * m


def transition_normal_forward(x, a, params, *, tile_b=4096):
    B, latent_dim = x.shape
    action_dim = a.shape[1]
    in_f = latent_dim + action_dim
    w1, w2, wout, b = params["w1"], params["w2"], params["wout"], params["b"]
    h1 = w1.shape[1]
    h2 = w2.shape[1]
    out_f = wout.shape[1]  # 2 * latent_dim

    # Wrapper-side concat folds layer 1 into a single dot inside the kernel.
    xa = jnp.concatenate([x, a], axis=-1)

    # Batch tile selection:
    #   * B >= 256: at least 2 grid steps (both v7x TensorCores get a shard)
    #     and tb a multiple of 128 so the transposed output block is an
    #     unmasked, lane-dense store.
    #   * small B: one tile equal to the full array dims.
    if B >= 256:
        tb = min(_round_up(tile_b, 128), _round_up(pl.cdiv(B, 2), 128))
    else:
        tb = B
    grid = (pl.cdiv(B, tb),)

    kernel = functools.partial(transition_normal_kernel, h1=h1, h2=h2)

    def nbytes(arr):
        return arr.size * arr.dtype.itemsize

    # Activations read once, weights/biases fetched once (VMEM-resident),
    # output written once; byte counts from the actual dtypes.
    cost = pl.CostEstimate(
        flops=2 * B * (in_f * h1 + h1 * h2 + h2 * out_f),
        transcendentals=0,
        bytes_accessed=(nbytes(xa) + nbytes(w1) + nbytes(w2) + nbytes(wout)
                        + nbytes(b) + B * out_f * 4),
    )

    out_t = pl.pallas_call(
        kernel,
        out_shape=jax.ShapeDtypeStruct((out_f, B), jnp.float32),
        grid_spec=pltpu.PrefetchScalarGridSpec(
            num_scalar_prefetch=0,
            grid=grid,
            in_specs=[
                # Activations: tiled over the batch axis.
                pl.BlockSpec((tb, in_f), lambda i: (i, 0)),
                # Weights / biases: constant block index -> VMEM-resident,
                # not re-fetched across grid steps.
                pl.BlockSpec((in_f, h1), lambda i: (0, 0)),
                pl.BlockSpec((h1, h2), lambda i: (0, 0)),
                pl.BlockSpec((h2, out_f), lambda i: (0, 0)),
                pl.BlockSpec((1, h1 + h2 + out_f), lambda i: (0, 0)),
            ],
            # Transposed output slab: batch tile on the lane axis.
            out_specs=pl.BlockSpec((out_f, tb), lambda i: (0, i)),
        ),
        compiler_params=pltpu.CompilerParams(
            dimension_semantics=("parallel",)),
        cost_estimate=cost,
    )(xa, w1, w2, wout, b)

    # Cheap layout plumbing back to the module's natural [B, latent] outputs.
    mu = out_t[:latent_dim, :].T
    logvar = out_t[latent_dim:, :].T
    return mu, logvar


def init_params(key, latent_dim, action_dim, layers):
    """Deterministic synthetic parameters matching the PyTorch module shapes."""
    h1, h2 = layers
    ks = jax.random.split(key, 8)
    in1 = latent_dim + action_dim

    def lin_w(k, fan_in, fan_out):
        scale = 1.0 / jnp.sqrt(fan_in)
        return jax.random.uniform(k, (fan_in, fan_out), jnp.float32, -scale, scale)

    def lin_b(k, fan_out):
        return jax.random.uniform(k, (1, fan_out), jnp.float32, -0.1, 0.1)

    w1 = lin_w(ks[0], in1, h1)                       # Dense layer 1 (latent+action)
    w2 = lin_w(ks[2], h1, h2)                        # Dense layer 2
    wmu = lin_w(ks[4], h2, latent_dim)               # mu head
    wlv = lin_w(ks[6], h2, latent_dim)               # logvar head
    b1, b2 = lin_b(ks[1], h1), lin_b(ks[3], h2)
    bmu, blv = lin_b(ks[5], latent_dim), lin_b(ks[7], latent_dim)

    return {
        # All matmul weights stored bf16 (no in-kernel W1 split any more).
        "w1": w1.astype(jnp.bfloat16),
        "w2": w2.astype(jnp.bfloat16),
        "wout": jnp.concatenate([wmu, wlv], axis=1).astype(jnp.bfloat16),
        # Packed biases [b1 | b2 | bmu | blv] in f32.
        "b": jnp.concatenate([b1, b2, bmu, blv], axis=1),
    }


def reference_forward(x, a, p, latent_dim):
    """Pure-JAX reference mirroring the PyTorch forward (f32 math, same weights)."""
    w1 = p["w1"].astype(jnp.float32)
    w2 = p["w2"].astype(jnp.float32)
    wout = p["wout"].astype(jnp.float32)
    b = p["b"]
    h1, h2 = w1.shape[1], w2.shape[1]
    xa = jnp.concatenate([x, a], axis=-1)
    h = jax.nn.relu(xa @ w1 + b[:, :h1])
    h = jax.nn.relu(h @ w2 + b[:, h1:h1 + h2])
    out = h @ wout + b[:, h1 + h2:]
    return out[:, :latent_dim], out[:, latent_dim:]


if __name__ == "__main__":
    latent_dim = 8
    action_dim = 4
    layers = (32, 32)
    batch = 4

    key = jax.random.PRNGKey(0)
    kx, ka, kp = jax.random.split(key, 3)
    x = jax.random.normal(kx, (batch, latent_dim), jnp.float32)
    a = jax.random.normal(ka, (batch, action_dim), jnp.float32)
    params = init_params(kp, latent_dim, action_dim, layers)

    mu, logvar = transition_normal_forward(x, a, params)
    jax.block_until_ready((mu, logvar))

    mu_ref, logvar_ref = reference_forward(x, a, params, latent_dim)
    # bf16 matmul operands (f32 accumulation) vs f32 reference -> loosened tol.
    # TODO(synk): if downstream exp(logvar) needs tighter error, make only the
    # final head dot use f32 operands.
    assert jnp.allclose(mu, mu_ref, atol=5e-2, rtol=5e-2), "mu mismatch"
    assert jnp.allclose(logvar, logvar_ref, atol=5e-2, rtol=5e-2), "logvar mismatch"

    print("KERNEL_OK")
</pallas_src>

<mosaic_0001>
module attributes {stable_mosaic.version = 11 : i64} {
  func.func @transition_normal_kernel(%arg0: i32, %arg1: memref<4x12xf32, #tpu.memory_space<vmem>>, %arg2: memref<12x32xbf16, #tpu.memory_space<vmem>>, %arg3: memref<32x32xbf16, #tpu.memory_space<vmem>>, %arg4: memref<32x16xbf16, #tpu.memory_space<vmem>>, %arg5: memref<1x80xf32, #tpu.memory_space<vmem>>, %arg6: memref<16x4xf32, #tpu.memory_space<vmem>>) attributes {dimension_semantics = [#tpu.dimension_semantics<parallel>], iteration_bounds = array<i64: 1>, scalar_prefetch = 0 : i64, scratch_operands = 0 : i64, tpu.core_type = #tpu.core_type<tc>, window_params = [{transform_indices = @transform_0, window_bounds = array<i64: 4, 12>}, {pipeline_mode = #tpu.pipeline_mode<synchronous>, transform_indices = @transform_1, window_bounds = array<i64: 12, 32>}, {pipeline_mode = #tpu.pipeline_mode<synchronous>, transform_indices = @transform_2, window_bounds = array<i64: 32, 32>}, {pipeline_mode = #tpu.pipeline_mode<synchronous>, transform_indices = @transform_3, window_bounds = array<i64: 32, 16>}, {pipeline_mode = #tpu.pipeline_mode<synchronous>, transform_indices = @transform_4, window_bounds = array<i64: 1, 80>}, {transform_indices = @transform_5, window_bounds = array<i64: 16, 4>}]} {
    %c0 = arith.constant 0 : index
    %c0_0 = arith.constant 0 : index
    %0 = vector.load %arg1[%c0, %c0_0] : memref<4x12xf32, #tpu.memory_space<vmem>>, vector<4x12xf32>
    %1 = arith.truncf %0 : vector<4x12xf32> to vector<4x12xbf16>
    %c0_1 = arith.constant 0 : index
    %c0_2 = arith.constant 0 : index
    %2 = vector.load %arg5[%c0_1, %c0_2] : memref<1x80xf32, #tpu.memory_space<vmem>>, vector<1x80xf32>
    %3 = vector.extract_strided_slice %2 {offsets = [0, 0], sizes = [1, 32], strides = [1, 1]} : vector<1x80xf32> to vector<1x32xf32>
    %4 = vector.extract_strided_slice %2 {offsets = [0, 32], sizes = [1, 32], strides = [1, 1]} : vector<1x80xf32> to vector<1x32xf32>
    %5 = vector.extract_strided_slice %2 {offsets = [0, 64], sizes = [1, 16], strides = [1, 1]} : vector<1x80xf32> to vector<1x16xf32>
    %c0_3 = arith.constant 0 : index
    %c0_4 = arith.constant 0 : index
    %6 = vector.load %arg2[%c0_3, %c0_4] : memref<12x32xbf16, #tpu.memory_space<vmem>>, vector<12x32xbf16>
    %cst = arith.constant dense<0.000000e+00> : vector<4x32xf32>
    %7 = tpu.matmul %1, %6, %cst {dimension_numbers = #tpu.dot_dimension_numbers<[1], [0], [0], [1], [0, 0, 1, 1], [], []>} : vector<4x12xbf16>, vector<12x32xbf16>, vector<4x32xf32> -> vector<4x32xf32>
    %8 = vector.broadcast %3 : vector<1x32xf32> to vector<4x32xf32>
    %9 = arith.addf %7, %8 : vector<4x32xf32>
    %cst_5 = arith.constant 0.000000e+00 : f32
    %10 = vector.broadcast %cst_5 : f32 to vector<4x32xf32>
    %11 = arith.maximumf %9, %10 : vector<4x32xf32>
    %12 = arith.truncf %11 : vector<4x32xf32> to vector<4x32xbf16>
    %c0_6 = arith.constant 0 : index
    %c0_7 = arith.constant 0 : index
    %13 = vector.load %arg3[%c0_6, %c0_7] : memref<32x32xbf16, #tpu.memory_space<vmem>>, vector<32x32xbf16>
    %cst_8 = arith.constant dense<0.000000e+00> : vector<4x32xf32>
    %14 = tpu.matmul %12, %13, %cst_8 {dimension_numbers = #tpu.dot_dimension_numbers<[1], [0], [0], [1], [0, 0, 1, 1], [], []>} : vector<4x32xbf16>, vector<32x32xbf16>, vector<4x32xf32> -> vector<4x32xf32>
    %15 = vector.broadcast %4 : vector<1x32xf32> to vector<4x32xf32>
    %16 = arith.addf %14, %15 : vector<4x32xf32>
    %cst_9 = arith.constant 0.000000e+00 : f32
    %17 = vector.broadcast %cst_9 : f32 to vector<4x32xf32>
    %18 = arith.maximumf %16, %17 : vector<4x32xf32>
    %19 = arith.truncf %18 : vector<4x32xf32> to vector<4x32xbf16>
    %c0_10 = arith.constant 0 : index
    %c0_11 = arith.constant 0 : index
    %20 = vector.load %arg4[%c0_10, %c0_11] : memref<32x16xbf16, #tpu.memory_space<vmem>>, vector<32x16xbf16>
    %cst_12 = arith.constant dense<0.000000e+00> : vector<4x16xf32>
    %21 = tpu.matmul %19, %20, %cst_12 {dimension_numbers = #tpu.dot_dimension_numbers<[1], [0], [0], [1], [0, 0, 1, 1], [], []>} : vector<4x32xbf16>, vector<32x16xbf16>, vector<4x16xf32> -> vector<4x16xf32>
    %22 = vector.broadcast %5 : vector<1x16xf32> to vector<4x16xf32>
    %23 = arith.addf %21, %22 : vector<4x16xf32>
    %24 = tpu.transpose %23, [1, 0] : vector<4x16xf32> -> vector<16x4xf32>
    %c0_13 = arith.constant 0 : index
    %c0_14 = arith.constant 0 : index
    %25 = vector.load %arg6[%c0_13, %c0_14] : memref<16x4xf32, #tpu.memory_space<vmem>>, vector<16x4xf32>
    tpu.vector_store %arg6[%c0_13, %c0_14], %24 {strides = array<i32>} : memref<16x4xf32, #tpu.memory_space<vmem>>, vector<16x4xf32>,
    return
  }
  func.func @transform_0(%arg0: i32) -> (i32, i32) {
    %c0_i32 = arith.constant 0 : i32
    %c0_i32_0 = arith.constant 0 : i32
    return %arg0, %c0_i32 : i32, i32
  }
  func.func @transform_1(%arg0: i32) -> (i32, i32) {
    %c0_i32 = arith.constant 0 : i32
    %c0_i32_0 = arith.constant 0 : i32
    %c0_i32_1 = arith.constant 0 : i32
    return %c0_i32, %c0_i32_0 : i32, i32
  }
  func.func @transform_2(%arg0: i32) -> (i32, i32) {
    %c0_i32 = arith.constant 0 : i32
    %c0_i32_0 = arith.constant 0 : i32
    %c0_i32_1 = arith.constant 0 : i32
    return %c0_i32, %c0_i32_0 : i32, i32
  }
  func.func @transform_3(%arg0: i32) -> (i32, i32) {
    %c0_i32 = arith.constant 0 : i32
    %c0_i32_0 = arith.constant 0 : i32
    %c0_i32_1 = arith.constant 0 : i32
    return %c0_i32, %c0_i32_0 : i32, i32
  }
  func.func @transform_4(%arg0: i32) -> (i32, i32) {
    %c0_i32 = arith.constant 0 : i32
    %c0_i32_0 = arith.constant 0 : i32
    %c0_i32_1 = arith.constant 0 : i32
    return %c0_i32, %c0_i32_0 : i32, i32
  }
  func.func @transform_5(%arg0: i32) -> (i32, i32) {
    %c0_i32 = arith.constant 0 : i32
    %c0_i32_0 = arith.constant 0 : i32
    return %c0_i32, %arg0 : i32, i32
  }
}

</mosaic_0001>

<llo_original>
// kernel: tpu_custom_call.1
$region0: #{tpu_custom_call.1}
  #allocation0 [shape = 'u32[]', space=smem, size = 0x4, offset = 0x4, fixed_abs, tag = 'smem constant byte address 0x4 - core index']
  #allocation1 [shape = 'u32[144,128]{1,0:T(1,128)}', space=vmem, size = 0x12000, scoped, tag = 'internal scratch']
  %s0 = inlined_call_operand.hbm [shape: f32[4,12], index: 0, kind: input, shape index: {}]
  %s1 = inlined_call_operand.vmem [shape: bf16[12,32], index: 1, kind: input, shape index: {}]
  %s2 = inlined_call_operand.vmem [shape: bf16[32,32], index: 2, kind: input, shape index: {}]
  %s3 = inlined_call_operand.vmem [shape: bf16[32,16], index: 3, kind: input, shape index: {}]
  %s4 = inlined_call_operand.vmem [shape: f32[1,80], index: 4, kind: input, shape index: {}]
  %s5 = inlined_call_operand.vmem [shape: f32[16,4], index: 5, kind: output, shape index: {}]
  %s6 = sld [smem:[#allocation0]]
  $region34: #{tpu_custom_call.1} parent=0
    _
  %s8 = ssub.s32 1, %s6
  %s9 = scalar_select 0, %s8, %s6
  $region1: #{tpu_custom_call.1} parent=0
    #allocation2 [shape = 'u8[2048]{0}', space=vmem, size = 0x800, scoped, tag = 'input window, operand 0, single buffered']
    #allocation3 [shape = 's32[1]{0}', space=sflag, size = 0x4, scoped, tag = 'scoped memory for tpu_custom_call.1']
    %10 = vsyncpa [#allocation3], 0
    // Predicated region
    $region2: #{tpu_custom_call.1} parent=1 // pred_check
      _
    $region3: #{tpu_custom_call.1} parent=1 // pred_check_branch
      %12 = sbr.rel (0) target = $region5
    $region4: #{tpu_custom_call.1} parent=1 // pred_region
      %s14 = ssub.s32 64, 64
      %15 = vsyncadd [#allocation3], %s14
      %s17 = sshll.u32 [#allocation2], 4
      %s18 = int_to_ptr.vmem [resolvable:$true] %s17
      %20 = dma.hbm_to_vmem [thread:$0]  %s0, 64, %s18, [#allocation3]
    $region5: #{tpu_custom_call.1} parent=1 // pred_fallthru
      _
    // Predicated region
    $region6: #{tpu_custom_call.1} parent=1 // pred_check
      _
    $region7: #{tpu_custom_call.1} parent=1 // pred_check_branch
      %22 = sbr.rel (0) target = $region9
    $region8: #{tpu_custom_call.1} parent=1 // pred_region
      _
    $region9: #{tpu_custom_call.1} parent=1 // pred_fallthru
      _
    // Predicated region
    $region10: #{tpu_custom_call.1} parent=1 // pred_check
      _
    $region11: #{tpu_custom_call.1} parent=1 // pred_check_branch
      %24 = sbr.rel (0) target = $region13
    $region12: #{tpu_custom_call.1} parent=1 // pred_region
      _
    $region13: #{tpu_custom_call.1} parent=1 // pred_fallthru
      _
    // Predicated region
    $region14: #{tpu_custom_call.1} parent=1 // pred_check
      _
    $region15: #{tpu_custom_call.1} parent=1 // pred_check_branch
      %26 = sbr.rel (0) target = $region17
    $region16: #{tpu_custom_call.1} parent=1 // pred_region
      _
    $region17: #{tpu_custom_call.1} parent=1 // pred_fallthru
      _
    // Predicated region
    $region18: #{tpu_custom_call.1} parent=1 // pred_check
      _
    $region19: #{tpu_custom_call.1} parent=1 // pred_check_branch
      %28 = sbr.rel (0) target = $region21
    $region20: #{tpu_custom_call.1} parent=1 // pred_region
      _
    $region21: #{tpu_custom_call.1} parent=1 // pred_fallthru
      _
    // Predicated region
    $region22: #{tpu_custom_call.1} parent=1 // pred_check
      _
    $region23: #{tpu_custom_call.1} parent=1 // pred_check_branch
      %30 = sbr.rel (0) target = $region25
    $region24: #{tpu_custom_call.1} parent=1 // pred_region
      %31 = dma.done [#allocation3], 64
    $region25: #{tpu_custom_call.1} parent=1 // pred_fallthru
      _
    %v33 = vld [vmem:[#allocation2] sm:$0xf]
    %v34 = vpack.c.bf16 %v33, %v33
    %v35 = vld [vmem:[%s4] sm:$0x1]
    %v36 = vld [vmem:[%s1] sm:$0xf]
    %v37 = vld [vmem:[%s1 + $0x4] sm:$0x3]
    %v39 = vlaneseq
    %v40 = vshrl.u32 %v39, 7
    %v41 = vsub.s32 0, %v40
    %v42 = vrot.slane %v35, %v41
    %v46 = vunpack.c.l.b16 %v36
    %v47 = vunpack.c.l.b16 %v37
    %v48 = vpack.c.b16 %v47, %v46
    %vm49 = vcmask 97280
    %v51 = vsel %vm49, %v34, 0
    %vm53 = vcmask 1045504
    %v55 = vsel %vm53, %v48, 0
    %57 = vmatprep.subr.bf16.mxu0 0
    %58 = vmatpush1.bf16.msra.mxu0 %v55
    %59 = vmatprep.subr.bf16.mxu0 0
    %60 = vmatpush1.bf16.msra.mxu0 0
    %61 = vmatprep.subr.bf16.mxu0 0
    %62 = vmatpush1.bf16.msra.mxu0 0
    %63 = vmatprep.subr.bf16.mxu0 0
    %64 = vmatpush1.bf16.msra.mxu0 0
    %65 = vmatprep.subr.bf16.mxu0 0
    %66 = vmatpush1.bf16.msra.mxu0 0
    %67 = vmatprep.subr.bf16.mxu0 0
    %68 = vmatpush1.bf16.msra.mxu0 0
    %69 = vmatprep.subr.bf16.mxu0 0
    %70 = vmatpush1.bf16.msra.mxu0 0
    %71 = vmatprep.subr.bf16.mxu0 0
    %72 = vmatpush1.bf16.msra.mxu0 0
    %73 = vmatprep.subr.bf16.mxu0 0
    %74 = vmatpush1.bf16.msra.mxu0 0
    %75 = vmatprep.subr.bf16.mxu0 0
    %76 = vmatpush1.bf16.msra.mxu0 0
    %77 = vmatprep.subr.bf16.mxu0 0
    %78 = vmatpush1.bf16.msra.mxu0 0
    %79 = vmatprep.subr.bf16.mxu0 0
    %80 = vmatpush1.bf16.msra.mxu0 0
    %81 = vmatprep.subr.bf16.mxu0 0
    %82 = vmatpush1.bf16.msra.mxu0 0
    %83 = vmatprep.subr.bf16.mxu0 0
    %84 = vmatpush1.bf16.msra.mxu0 0
    %85 = vmatprep.subr.bf16.mxu0 0
    %86 = vmatpush1.bf16.msra.mxu0 0
    %87 = vmatprep.subr.bf16.mxu0 0
    %88 = vmatpush1.bf16.msra.mxu0 0
    %89 = vmatprep.mubr.bf16.mxu0 0
    %90 = vmatmul.mubr.bf16.gmra.mrb[0].mxu0 %v51
    %v91 = vpop.f32.mrb[0].mxu0
    %v92 = vadd.f32 %v42, %v91
    %v93 = vpop.f32.mrb[0].mxu0
    %v94 = vpop.f32.mrb[0].mxu0
    %v95 = vpop.f32.mrb[0].mxu0
    %96 = vdwg.mxu0
    %v97 = vmax.f32 %v92, 0.0
    %v98 = vpack.c.bf16 %v97, %v97
    %v99 = vld [vmem:[%s2] sm:$0xf]
    %v100 = vld [vmem:[%s2 + $0x4] sm:$0xf]
    %v101 = vld [vmem:[%s2 + $0x8] sm:$0xf]
    %v102 = vld [vmem:[%s2 + $0xc] sm:$0xf]
    %v107 = vunpack.c.l.b16 %v99
    %v108 = vunpack.c.l.b16 %v100
    %v109 = vunpack.c.l.b16 %v101
    %v110 = vunpack.c.l.b16 %v102
    %v111 = vpack.c.b16 %v108, %v107
    %v112 = vpack.c.b16 %v110, %v109
    %115 = vrot.lane.b32.xlu0 %v42, 96
    %v116 = vpop.permute.xlu0 %115
    %vm118 = vcmask 261120
    %v120 = vsel %vm118, %v98, 0
    %122 = vmatprep.subr.bf16.mxu0 0
    %123 = vmatpush1.bf16.msra.mxu0 %v111
    %124 = vmatprep.subr.bf16.mxu0 0
    %125 = vmatpush1.bf16.msra.mxu0 %v112
    %126 = vmatprep.subr.bf16.mxu0 0
    %127 = vmatpush1.bf16.msra.mxu0 0
    %128 = vmatprep.subr.bf16.mxu0 0
    %129 = vmatpush1.bf16.msra.mxu0 0
    %130 = vmatprep.subr.bf16.mxu0 0
    %131 = vmatpush1.bf16.msra.mxu0 0
    %132 = vmatprep.subr.bf16.mxu0 0
    %133 = vmatpush1.bf16.msra.mxu0 0
    %134 = vmatprep.subr.bf16.mxu0 0
    %135 = vmatpush1.bf16.msra.mxu0 0
    %136 = vmatprep.subr.bf16.mxu0 0
    %137 = vmatpush1.bf16.msra.mxu0 0
    %138 = vmatprep.subr.bf16.mxu0 0
    %139 = vmatpush1.bf16.msra.mxu0 0
    %140 = vmatprep.subr.bf16.mxu0 0
    %141 = vmatpush1.bf16.msra.mxu0 0
    %142 = vmatprep.subr.bf16.mxu0 0
    %143 = vmatpush1.bf16.msra.mxu0 0
    %144 = vmatprep.subr.bf16.mxu0 0
    %145 = vmatpush1.bf16.msra.mxu0 0
    %146 = vmatprep.subr.bf16.mxu0 0
    %147 = vmatpush1.bf16.msra.mxu0 0
    %148 = vmatprep.subr.bf16.mxu0 0
    %149 = vmatpush1.bf16.msra.mxu0 0
    %150 = vmatprep.subr.bf16.mxu0 0
    %151 = vmatpush1.bf16.msra.mxu0 0
    %152 = vmatprep.subr.bf16.mxu0 0
    %153 = vmatpush1.bf16.msra.mxu0 0
    %154 = vmatprep.mubr.bf16.mxu0 0
    %155 = vmatmul.mubr.bf16.gmra.mrb[0].mxu0 %v120
    %v156 = vpop.f32.mrb[0].mxu0
    %v157 = vadd.f32 %v116, %v156
    %v158 = vpop.f32.mrb[0].mxu0
    %v159 = vpop.f32.mrb[0].mxu0
    %v160 = vpop.f32.mrb[0].mxu0
    %161 = vdwg.mxu0
    %v162 = vmax.f32 %v157, 0.0
    %v163 = vpack.c.bf16 %v162, %v162
    %v164 = vld [vmem:[%s3] sm:$0xf]
    %v165 = vld [vmem:[%s3 + $0x4] sm:$0xf]
    %v166 = vld [vmem:[%s3 + $0x8] sm:$0xf]
    %v167 = vld [vmem:[%s3 + $0xc] sm:$0xf]
    %v172 = vunpack.c.l.b16 %v164
    %v173 = vunpack.c.l.b16 %v165
    %v174 = vunpack.c.l.b16 %v166
    %v175 = vunpack.c.l.b16 %v167
    %v176 = vpack.c.b16 %v173, %v172
    %v177 = vpack.c.b16 %v175, %v174
    %180 = vrot.lane.b32.xlu0 %v42, 64
    %v181 = vpop.permute.xlu0 %180
    %v184 = vsel %vm118, %v163, 0
    %186 = vmatprep.subr.bf16.mxu0 0
    %187 = vmatpush1.bf16.msra.mxu0 %v176
    %188 = vmatprep.subr.bf16.mxu0 0
    %189 = vmatpush1.bf16.msra.mxu0 %v177
    %190 = vmatprep.subr.bf16.mxu0 0
    %191 = vmatpush1.bf16.msra.mxu0 0
    %192 = vmatprep.subr.bf16.mxu0 0
    %193 = vmatpush1.bf16.msra.mxu0 0
    %194 = vmatprep.subr.bf16.mxu0 0
    %195 = vmatpush1.bf16.msra.mxu0 0
    %196 = vmatprep.subr.bf16.mxu0 0
    %197 = vmatpush1.bf16.msra.mxu0 0
    %198 = vmatprep.subr.bf16.mxu0 0
    %199 = vmatpush1.bf16.msra.mxu0 0
    %200 = vmatprep.subr.bf16.mxu0 0
    %201 = vmatpush1.bf16.msra.mxu0 0
    %202 = vmatprep.subr.bf16.mxu0 0
    %203 = vmatpush1.bf16.msra.mxu0 0
    %204 = vmatprep.subr.bf16.mxu0 0
    %205 = vmatpush1.bf16.msra.mxu0 0
    %206 = vmatprep.subr.bf16.mxu0 0
    %207 = vmatpush1.bf16.msra.mxu0 0
    %208 = vmatprep.subr.bf16.mxu0 0
    %209 = vmatpush1.bf16.msra.mxu0 0
    %210 = vmatprep.subr.bf16.mxu0 0
    %211 = vmatpush1.bf16.msra.mxu0 0
    %212 = vmatprep.subr.bf16.mxu0 0
    %213 = vmatpush1.bf16.msra.mxu0 0
    %214 = vmatprep.subr.bf16.mxu0 0
    %215 = vmatpush1.bf16.msra.mxu0 0
    %216 = vmatprep.subr.bf16.mxu0 0
    %217 = vmatpush1.bf16.msra.mxu0 0
    %218 = vmatprep.mubr.bf16.mxu0 0
    %219 = vmatmul.mubr.bf16.gmra.mrb[0].mxu0 %v184
    %v220 = vpop.f32.mrb[0].mxu0
    %v221 = vadd.f32 %v181, %v220
    %v222 = vpop.f32.mrb[0].mxu0
    %v223 = vpop.f32.mrb[0].mxu0
    %v224 = vpop.f32.mrb[0].mxu0
    %225 = vdwg.mxu0
    %226 = vxpose.xlu0.b32.start [1/16] %v221, 128
    %227 = vxpose.xlu0.b32.cont [2/16] 0.0, 128
    %228 = vxpose.xlu0.b32.cont [3/16] 0.0, 128
    %229 = vxpose.xlu0.b32.cont [4/16] 0.0, 128
    %230 = vxpose.xlu0.b32.cont [5/16] 0.0, 128
    %231 = vxpose.xlu0.b32.cont [6/16] 0.0, 128
    %232 = vxpose.xlu0.b32.cont [7/16] 0.0, 128
    %233 = vxpose.xlu0.b32.cont [8/16] 0.0, 128
    %234 = vxpose.xlu0.b32.cont [9/16] 0.0, 128
    %235 = vxpose.xlu0.b32.cont [10/16] 0.0, 128
    %236 = vxpose.xlu0.b32.cont [11/16] 0.0, 128
    %237 = vxpose.xlu0.b32.cont [12/16] 0.0, 128
    %238 = vxpose.xlu0.b32.cont [13/16] 0.0, 128
    %239 = vxpose.xlu0.b32.cont [14/16] 0.0, 128
    %240 = vxpose.xlu0.b32.cont [15/16] 0.0, 128
    %241 = vxpose.xlu0.b32.end [16/16] 0.0, 128
    %v242 = vpop.trf.xlu0
    %v243 = vpop.trf.xlu0
    %v244 = vpop.trf.xlu0
    %v245 = vpop.trf.xlu0
    %v246 = vpop.trf.xlu0
    %v247 = vpop.trf.xlu0
    %v248 = vpop.trf.xlu0
    %v249 = vpop.trf.xlu0
    %v250 = vpop.trf.xlu0
    %v251 = vpop.trf.xlu0
    %v252 = vpop.trf.xlu0
    %v253 = vpop.trf.xlu0
    %v254 = vpop.trf.xlu0
    %v255 = vpop.trf.xlu0
    %v256 = vpop.trf.xlu0
    %v257 = vpop.trf.xlu0
    %vm258 = vcmask 31744
    %259 = vst.msk [vmem:[%s5] sm:$0xff] %vm258, %v242
    %260 = vst.msk [vmem:[%s5 + $0x8] sm:$0xff] %vm258, %v243
    // Predicated region
    $region26: #{tpu_custom_call.1} parent=1 // pred_check
      _
    $region27: #{tpu_custom_call.1} parent=1 // pred_check_branch
      %262 = sbr.rel (0) target = $region29
    $region28: #{tpu_custom_call.1} parent=1 // pred_region
      _
    $region29: #{tpu_custom_call.1} parent=1 // pred_fallthru
      _
    // Predicated region
    $region30: #{tpu_custom_call.1} parent=1 // pred_check
      _
    $region31: #{tpu_custom_call.1} parent=1 // pred_check_branch
      %264 = sbr.rel (0) target = $region33
    $region32: #{tpu_custom_call.1} parent=1 // pred_region
      _
    $region33: #{tpu_custom_call.1} parent=1 // pred_fallthru
      _
    %265 = vsyncpa [#allocation3], 1

</llo_original>
